<compile_context>
chip_gen: v6e
topology: v6e:2x2x1
jax: 0.10.0
libtpu: 0.0.40
codegen_flags: <defaults>
</compile_context>

<pallas_src>
import functools

import jax
import jax.numpy as jnp
from jax import lax
from jax.experimental import pallas as pl
from jax.experimental.pallas import tpu as pltpu


# ------------------------- fused projection kernel(s) -------------------------


def _proj_body(x_ref, w_refs, o_refs):
    # One read of the activation tile, one deep MXU matmul per output (f32 acc).
    x = x_ref[...]
    for w_ref, o_ref in zip(w_refs, o_refs):
        o_ref[...] = jnp.dot(
            x, w_ref[...], preferred_element_type=jnp.float32
        ).astype(o_ref.dtype)


def _proj_kernel_1(x_ref, w0, o0):
    _proj_body(x_ref, (w0,), (o0,))


def _proj_kernel_2(x_ref, w0, w1, o0, o1):
    _proj_body(x_ref, (w0, w1), (o0, o1))


def _proj_kernel_3(x_ref, w0, w1, w2, o0, o1, o2):
    _proj_body(x_ref, (w0, w1, w2), (o0, o1, o2))


_PROJ_KERNELS = {1: _proj_kernel_1, 2: _proj_kernel_2, 3: _proj_kernel_3}


def project_pallas(x2d, weights, *, tm=512):
    """Fused multi-output projection: tuple(x2d @ w for w in weights).

    x2d: (rows, D), each w: (D, N_w). Row-tiled (tm up to 512), bias-free,
    weights resident (constant block index => fetched once), lane-dense outputs.
    """
    rows, D = x2d.shape
    n = len(weights)
    tm = min(tm, rows)

    in_specs = [pl.BlockSpec((tm, D), lambda i: (i, 0))]
    for w in weights:
        assert w.shape[0] == D
        in_specs.append(pl.BlockSpec(w.shape, lambda i: (0, 0)))

    out_shape = tuple(
        jax.ShapeDtypeStruct((rows, w.shape[1]), x2d.dtype) for w in weights
    )
    out_specs = tuple(
        pl.BlockSpec((tm, w.shape[1]), lambda i: (i, 0)) for w in weights
    )

    out = pl.pallas_call(
        _PROJ_KERNELS[n],
        out_shape=out_shape,
        grid=(pl.cdiv(rows, tm),),
        in_specs=in_specs,
        out_specs=out_specs,
        compiler_params=pltpu.CompilerParams(
            dimension_semantics=("parallel",),
            vmem_limit_bytes=48 * 1024 * 1024,  # explicit budget, < v7x 64 MiB
        ),
    )(x2d, *weights)
    return out if isinstance(out, (tuple, list)) else (out,)


# --------------------- flash attention + fused to_out kernel ---------------------


def _flash_attn_kernel(q_ref, k_ref, v_ref, wo_ref, bo_ref, o_ref,
                       m_sc, l_sc, acc_sc, out_sc,
                       *, scale, kv_len, block_kv):
    # grid = (batch, q-tile, head, kv-tile); head & kv are "arbitrary" reductions.
    h = pl.program_id(2)
    kv = pl.program_id(3)
    last_h = pl.num_programs(2) - 1
    last_kv = pl.num_programs(3) - 1

    @pl.when(kv == 0)
    def _():  # new (batch, q-tile, head): reset the online-softmax state
        m_sc[...] = jnp.full_like(m_sc, -jnp.inf)
        l_sc[...] = jnp.zeros_like(l_sc)
        acc_sc[...] = jnp.zeros_like(acc_sc)

    @pl.when((h == 0) & (kv == 0))
    def _():  # new (batch, q-tile): reset the fused to_out accumulator
        out_sc[...] = jnp.zeros_like(out_sc)

    # Per-head blocks delivered by BlockSpec (no in-kernel lane slicing).
    q = q_ref[0, 0] * scale          # (tq, dh); scale hidden under the MXU slot
    k = k_ref[0, 0]                  # (tk, dh)
    v = v_ref[0, 0]                  # (tk, dh)

    s = lax.dot_general(q, k, (((1,), (1,)), ((), ())),
                        preferred_element_type=jnp.float32)   # (tq, tk)

    if kv_len % block_kv != 0:  # static: last kv tile is padded -> mask it out
        row = kv * block_kv + lax.broadcasted_iota(jnp.int32, v.shape, 0)
        v = jnp.where(row < kv_len, v, jnp.zeros_like(v))
        col = kv * block_kv + lax.broadcasted_iota(jnp.int32, s.shape, 1)
        s = jnp.where(col < kv_len, s, -jnp.inf)

    m_prev = m_sc[...]
    m_new = jnp.maximum(m_prev, jnp.max(s, axis=-1, keepdims=True))
    alpha = jnp.exp(m_prev - m_new)
    p = jnp.exp(s - m_new)
    l_sc[...] = alpha * l_sc[...] + jnp.sum(p, axis=-1, keepdims=True)
    acc_sc[...] = alpha * acc_sc[...] + lax.dot_general(
        p.astype(v.dtype), v, (((1,), (0,)), ((), ())),
        preferred_element_type=jnp.float32)
    m_sc[...] = m_new

    @pl.when(kv == last_kv)
    def _():
        # normalize this head and fold it into the fused output projection
        oh = acc_sc[...] * pl.reciprocal(l_sc[...], approx=True)   # (tq, dh)
        wo_h = wo_ref[0]                                           # (dh, Dq)
        out_sc[...] += jnp.dot(oh.astype(wo_h.dtype), wo_h,
                               preferred_element_type=jnp.float32)

        @pl.when(h == last_h)
        def _():
            o_ref[0] = (out_sc[...] + bo_ref[...].astype(jnp.float32)
                        ).astype(o_ref.dtype)


def flash_attention_pallas(q, k, v, wo, bo, *, scale, tq=256, tk=256):
    """softmax(scale * q k^T) v with fused to_out projection + bias.

    q: (B,H,N,dh)  k,v: (B,H,M,dh)  wo: (H,dh,Dq)  bo: (1,Dq)  ->  (B,N,Dq)
    """
    B, H, N, dh = q.shape
    M = k.shape[2]
    Dq = wo.shape[2]
    tq = min(tq, N)
    tk = min(tk, M)

    kernel = functools.partial(_flash_attn_kernel, scale=scale, kv_len=M, block_kv=tk)
    return pl.pallas_call(
        kernel,
        out_shape=jax.ShapeDtypeStruct((B, N, Dq), q.dtype),
        grid=(B, pl.cdiv(N, tq), H, pl.cdiv(M, tk)),
        in_specs=[
            pl.BlockSpec((1, 1, tq, dh), lambda b, i, h, kv: (b, h, i, 0)),
            pl.BlockSpec((1, 1, tk, dh), lambda b, i, h, kv: (b, h, kv, 0)),
            pl.BlockSpec((1, 1, tk, dh), lambda b, i, h, kv: (b, h, kv, 0)),
            pl.BlockSpec((1, dh, Dq),    lambda b, i, h, kv: (h, 0, 0)),
            pl.BlockSpec((1, Dq),        lambda b, i, h, kv: (0, 0)),
        ],
        out_specs=pl.BlockSpec((1, tq, Dq), lambda b, i, h, kv: (b, i, 0)),
        scratch_shapes=[
            pltpu.VMEM((tq, 1), jnp.float32),    # running max  m
            pltpu.VMEM((tq, 1), jnp.float32),    # running sum  l
            pltpu.VMEM((tq, dh), jnp.float32),   # per-head numerator accumulator
            pltpu.VMEM((tq, Dq), jnp.float32),   # fused to_out accumulator
        ],
        compiler_params=pltpu.CompilerParams(
            dimension_semantics=("parallel", "parallel", "arbitrary", "arbitrary"),
            vmem_limit_bytes=32 * 1024 * 1024,   # explicit budget with headroom
        ),
    )(q, k, v, wo, bo)


# --------------------------- module-level wrapper -----------------------------


def init_params(key, query_dim, context_dim, heads, dim_head, dtype=jnp.float32):
    """Deterministic synthetic parameters (shapes match the nn.Module)."""
    inner_dim = heads * dim_head
    k1, k2, k3, k4, k5 = jax.random.split(key, 5)
    s = 0.05
    return {
        # stored as (in, out) so kernels compute x @ W
        "wq": jax.random.normal(k1, (query_dim, inner_dim), dtype) * s,    # bias=False
        "wk": jax.random.normal(k2, (context_dim, inner_dim), dtype) * s,  # bias=False
        "wv": jax.random.normal(k3, (context_dim, inner_dim), dtype) * s,  # bias=False
        "wo": jax.random.normal(k4, (inner_dim, query_dim), dtype) * s,
        "bo": jax.random.normal(k5, (query_dim,), dtype) * s,
    }


def cross_attention(x, params, heads, dim_head, context=None, *, tq=256, tk=256, tm=512):
    """Forward pass of CrossAttention (eval mode, no mask / extra tokens)."""
    B, N, Dq = x.shape
    scale = float(dim_head) ** -0.5

    x2d = x.reshape(B * N, Dq)
    if context is None:
        # self-attention: fused QKV projection, activations read from HBM once
        q2, k2, v2 = project_pallas(
            x2d, (params["wq"], params["wk"], params["wv"]), tm=tm)
        M = N
    else:
        M = context.shape[1]
        c2d = context.reshape(B * M, context.shape[2])
        q2 = project_pallas(x2d, (params["wq"],), tm=tm)[0]
        k2, v2 = project_pallas(c2d, (params["wk"], params["wv"]), tm=tm)

    # head-major layout so the attention BlockSpec delivers per-head blocks
    def to_heads(t2d, S):
        return t2d.reshape(B, S, heads, dim_head).transpose(0, 2, 1, 3)

    q4 = to_heads(q2, N)
    k4 = to_heads(k2, M)
    v4 = to_heads(v2, M)

    wo3 = params["wo"].reshape(heads, dim_head, Dq)   # free reshape (row = h*dh + d)
    bo2 = params["bo"].reshape(1, Dq)

    # Dropout(0.0) is identity in eval mode.
    return flash_attention_pallas(q4, k4, v4, wo3, bo2, scale=scale, tq=tq, tk=tk)


# ------------------------------ pure-JAX reference ----------------------------


def reference_forward(x, params, heads, dim_head, context=None):
    B, N, Dq = x.shape
    ctx = x if context is None else context
    M = ctx.shape[1]
    scale = float(dim_head) ** -0.5
    q = x @ params["wq"]
    k = ctx @ params["wk"]
    v = ctx @ params["wv"]
    qh = q.reshape(B, N, heads, dim_head).transpose(0, 2, 1, 3)
    kh = k.reshape(B, M, heads, dim_head).transpose(0, 2, 1, 3)
    vh = v.reshape(B, M, heads, dim_head).transpose(0, 2, 1, 3)
    s = jnp.einsum("bhnd,bhmd->bhnm", qh, kh) * scale
    p = jax.nn.softmax(s, axis=-1)
    o = jnp.einsum("bhnm,bhmd->bhnd", p, vh)
    o = o.transpose(0, 2, 1, 3).reshape(B, N, heads * dim_head)
    return o @ params["wo"] + params["bo"]


# ----------------------------------- main --------------------------------------


if __name__ == "__main__":
    # small shapes; query_dim/inner chosen lane-dense (multiple of 128)
    B, N, M_ctx = 2, 16, 20
    query_dim = context_dim = 128
    heads, dim_head = 4, 32            # inner_dim = 128

    key = jax.random.PRNGKey(0)
    kx, kc, kp = jax.random.split(key, 3)
    x = jax.random.normal(kx, (B, N, query_dim), jnp.float32)
    ctx = jax.random.normal(kc, (B, M_ctx, context_dim), jnp.float32)
    params = init_params(kp, query_dim, context_dim, heads, dim_head)

    # self-attention path (context defaults to x), default tiles
    out_self = jax.block_until_ready(cross_attention(x, params, heads, dim_head))
    ref_self = reference_forward(x, params, heads, dim_head)
    assert out_self.shape == (B, N, query_dim)
    assert jnp.allclose(out_self, ref_self, atol=2e-3, rtol=1e-2), "self-attn mismatch"

    # cross-attention path; small tiles exercise multi-step (q-tile, head, kv-tile)
    # flash accumulation and the kv-padding mask (20 % 8 != 0)
    out_cross = jax.block_until_ready(
        cross_attention(x, params, heads, dim_head, context=ctx, tq=8, tk=8, tm=16))
    ref_cross = reference_forward(x, params, heads, dim_head, context=ctx)
    assert out_cross.shape == (B, N, query_dim)
    assert jnp.allclose(out_cross, ref_cross, atol=2e-3, rtol=1e-2), "cross-attn mismatch"

    print("KERNEL_OK")
</pallas_src>

<mosaic_0001>
module attributes {stable_mosaic.version = 11 : i64} {
  func.func @_proj_kernel_3(%arg0: i32, %arg1: memref<32x128xf32, #tpu.memory_space<vmem>>, %arg2: memref<128x128xf32, #tpu.memory_space<vmem>>, %arg3: memref<128x128xf32, #tpu.memory_space<vmem>>, %arg4: memref<128x128xf32, #tpu.memory_space<vmem>>, %arg5: memref<32x128xf32, #tpu.memory_space<vmem>>, %arg6: memref<32x128xf32, #tpu.memory_space<vmem>>, %arg7: memref<32x128xf32, #tpu.memory_space<vmem>>) attributes {dimension_semantics = [#tpu.dimension_semantics<parallel>], iteration_bounds = array<i64: 1>, scalar_prefetch = 0 : i64, scratch_operands = 0 : i64, tpu.core_type = #tpu.core_type<tc>, window_params = [{transform_indices = @transform_0, window_bounds = array<i64: 32, 128>}, {pipeline_mode = #tpu.pipeline_mode<synchronous>, transform_indices = @transform_1, window_bounds = array<i64: 128, 128>}, {pipeline_mode = #tpu.pipeline_mode<synchronous>, transform_indices = @transform_2, window_bounds = array<i64: 128, 128>}, {pipeline_mode = #tpu.pipeline_mode<synchronous>, transform_indices = @transform_3, window_bounds = array<i64: 128, 128>}, {transform_indices = @transform_4, window_bounds = array<i64: 32, 128>}, {transform_indices = @transform_5, window_bounds = array<i64: 32, 128>}, {transform_indices = @transform_6, window_bounds = array<i64: 32, 128>}]} {
    %c0 = arith.constant 0 : index
    %c0_0 = arith.constant 0 : index
    %0 = vector.load %arg1[%c0, %c0_0] : memref<32x128xf32, #tpu.memory_space<vmem>>, vector<32x128xf32>
    %c0_1 = arith.constant 0 : index
    %c0_2 = arith.constant 0 : index
    %1 = vector.load %arg2[%c0_1, %c0_2] : memref<128x128xf32, #tpu.memory_space<vmem>>, vector<128x128xf32>
    %cst = arith.constant dense<0.000000e+00> : vector<32x128xf32>
    %2 = tpu.matmul %0, %1, %cst {dimension_numbers = #tpu.dot_dimension_numbers<[1], [0], [0], [1], [0, 0, 1, 1], [], []>} : vector<32x128xf32>, vector<128x128xf32>, vector<32x128xf32> -> vector<32x128xf32>
    %c0_3 = arith.constant 0 : index
    %c0_4 = arith.constant 0 : index
    %3 = vector.load %arg5[%c0_3, %c0_4] : memref<32x128xf32, #tpu.memory_space<vmem>>, vector<32x128xf32>
    tpu.vector_store %arg5[%c0_3, %c0_4], %2 {strides = array<i32>} : memref<32x128xf32, #tpu.memory_space<vmem>>, vector<32x128xf32>,
    %c0_5 = arith.constant 0 : index
    %c0_6 = arith.constant 0 : index
    %4 = vector.load %arg3[%c0_5, %c0_6] : memref<128x128xf32, #tpu.memory_space<vmem>>, vector<128x128xf32>
    %cst_7 = arith.constant dense<0.000000e+00> : vector<32x128xf32>
    %5 = tpu.matmul %0, %4, %cst_7 {dimension_numbers = #tpu.dot_dimension_numbers<[1], [0], [0], [1], [0, 0, 1, 1], [], []>} : vector<32x128xf32>, vector<128x128xf32>, vector<32x128xf32> -> vector<32x128xf32>
    %c0_8 = arith.constant 0 : index
    %c0_9 = arith.constant 0 : index
    %6 = vector.load %arg6[%c0_8, %c0_9] : memref<32x128xf32, #tpu.memory_space<vmem>>, vector<32x128xf32>
    tpu.vector_store %arg6[%c0_8, %c0_9], %5 {strides = array<i32>} : memref<32x128xf32, #tpu.memory_space<vmem>>, vector<32x128xf32>,
    %c0_10 = arith.constant 0 : index
    %c0_11 = arith.constant 0 : index
    %7 = vector.load %arg4[%c0_10, %c0_11] : memref<128x128xf32, #tpu.memory_space<vmem>>, vector<128x128xf32>
    %cst_12 = arith.constant dense<0.000000e+00> : vector<32x128xf32>
    %8 = tpu.matmul %0, %7, %cst_12 {dimension_numbers = #tpu.dot_dimension_numbers<[1], [0], [0], [1], [0, 0, 1, 1], [], []>} : vector<32x128xf32>, vector<128x128xf32>, vector<32x128xf32> -> vector<32x128xf32>
    %c0_13 = arith.constant 0 : index
    %c0_14 = arith.constant 0 : index
    %9 = vector.load %arg7[%c0_13, %c0_14] : memref<32x128xf32, #tpu.memory_space<vmem>>, vector<32x128xf32>
    tpu.vector_store %arg7[%c0_13, %c0_14], %8 {strides = array<i32>} : memref<32x128xf32, #tpu.memory_space<vmem>>, vector<32x128xf32>,
    return
  }
  func.func @transform_0(%arg0: i32) -> (i32, i32) {
    %c0_i32 = arith.constant 0 : i32
    %c0_i32_0 = arith.constant 0 : i32
    return %arg0, %c0_i32 : i32, i32
  }
  func.func @transform_1(%arg0: i32) -> (i32, i32) {
    %c0_i32 = arith.constant 0 : i32
    %c0_i32_0 = arith.constant 0 : i32
    %c0_i32_1 = arith.constant 0 : i32
    return %c0_i32, %c0_i32_0 : i32, i32
  }
  func.func @transform_2(%arg0: i32) -> (i32, i32) {
    %c0_i32 = arith.constant 0 : i32
    %c0_i32_0 = arith.constant 0 : i32
    %c0_i32_1 = arith.constant 0 : i32
    return %c0_i32, %c0_i32_0 : i32, i32
  }
  func.func @transform_3(%arg0: i32) -> (i32, i32) {
    %c0_i32 = arith.constant 0 : i32
    %c0_i32_0 = arith.constant 0 : i32
    %c0_i32_1 = arith.constant 0 : i32
    return %c0_i32, %c0_i32_0 : i32, i32
  }
  func.func @transform_4(%arg0: i32) -> (i32, i32) {
    %c0_i32 = arith.constant 0 : i32
    %c0_i32_0 = arith.constant 0 : i32
    return %arg0, %c0_i32 : i32, i32
  }
  func.func @transform_5(%arg0: i32) -> (i32, i32) {
    %c0_i32 = arith.constant 0 : i32
    %c0_i32_0 = arith.constant 0 : i32
    return %arg0, %c0_i32 : i32, i32
  }
  func.func @transform_6(%arg0: i32) -> (i32, i32) {
    %c0_i32 = arith.constant 0 : i32
    %c0_i32_0 = arith.constant 0 : i32
    return %arg0, %c0_i32 : i32, i32
  }
}

</mosaic_0001>

<llo_original>
// kernel: tpu_custom_call.1
$region0: #{tpu_custom_call.1}
  #allocation0 [shape = 'u32[]', space=smem, size = 0x4, offset = 0x4, fixed_abs, tag = 'smem constant byte address 0x4 - core index']
  #allocation1 [shape = 'u32[144,128]{1,0:T(1,128)}', space=vmem, size = 0x12000, scoped, tag = 'internal scratch']
  %s0 = inlined_call_operand.hbm [shape: f32[32,128], index: 0, kind: input, shape index: {}]
  %s1 = inlined_call_operand.hbm [shape: f32[128,128], index: 1, kind: input, shape index: {}]
  %s2 = inlined_call_operand.hbm [shape: f32[128,128], index: 2, kind: input, shape index: {}]
  %s3 = inlined_call_operand.hbm [shape: f32[128,128], index: 3, kind: input, shape index: {}]
  %s4 = inlined_call_operand.hbm [shape: f32[32,128], index: 4, kind: output, shape index: {0}]
  %s5 = inlined_call_operand.hbm [shape: f32[32,128], index: 5, kind: output, shape index: {1}]
  %s6 = inlined_call_operand.hbm [shape: f32[32,128], index: 6, kind: output, shape index: {2}]
  %7 = xla_tuple %s4, %s5, %s6
  %s8 = sld [smem:[#allocation0]]
  $region58: #{tpu_custom_call.1} parent=0
    _
  %s10 = ssub.s32 1, %s8
  %s11 = scalar_select 0, %s10, %s8
  $region1: #{tpu_custom_call.1} parent=0
    #allocation2 [shape = 'u8[16384]{0}', space=vmem, size = 0x4000, scoped, tag = 'input window, operand 0, single buffered']
    #allocation3 [shape = 's32[1]{0}', space=sflag, size = 0x4, scoped, tag = 'scoped memory for tpu_custom_call.1']
    #allocation4 [shape = 's32[1]{0}', space=sflag, size = 0x4, scoped, tag = 'scoped memory for tpu_custom_call.1']
    #allocation5 [shape = 'u8[65536]{0}', space=vmem, size = 0x10000, scoped, tag = 'input window, operand 1, single buffered']
    #allocation6 [shape = 's32[1]{0}', space=sflag, size = 0x4, scoped, tag = 'scoped memory for tpu_custom_call.1']
    #allocation7 [shape = 'u8[65536]{0}', space=vmem, size = 0x10000, scoped, tag = 'input window, operand 2, single buffered']
    #allocation8 [shape = 'u8[65536]{0}', space=vmem, size = 0x10000, scoped, tag = 'input window, operand 3, single buffered']
    #allocation9 [shape = 's32[1]{0}', space=sflag, size = 0x4, scoped, tag = 'scoped memory for tpu_custom_call.1']
    #allocation10 [shape = 'u8[16384]{0}', space=vmem, size = 0x4000, scoped, tag = 'output window, operand 0, single buffered']
    #allocation11 [shape = 'u8[16384]{0}', space=vmem, size = 0x4000, scoped, tag = 'output window, operand 1, single buffered']
    #allocation12 [shape = 's32[1]{0}', space=sflag, size = 0x4, scoped, tag = 'scoped memory for tpu_custom_call.1']
    #allocation13 [shape = 'u8[16384]{0}', space=vmem, size = 0x4000, scoped, tag = 'output window, operand 2, single buffered']
    %12 = vsyncpa [#allocation3], 0
    %13 = vsyncpa [#allocation6], 0
    %14 = vsyncpa [#allocation9], 0
    %15 = vsyncpa [#allocation4], 0
    %16 = vsyncpa [#allocation12], 0
    // Predicated region
    $region2: #{tpu_custom_call.1} parent=1 // pred_check
      _
    $region3: #{tpu_custom_call.1} parent=1 // pred_check_branch
      %18 = sbr.rel (0) target = $region5
    $region4: #{tpu_custom_call.1} parent=1 // pred_region
      %s20 = ssub.s32 512, 512
      %21 = vsyncadd [#allocation3], %s20
      %s22 = sshll.u32 [#allocation2], 4
      %s23 = int_to_ptr.vmem [resolvable:$true] %s22
      %28 = dma.hbm_to_vmem [thread:$0]  %s0, 512, %s23, [#allocation3], 128, 128, 8
    $region5: #{tpu_custom_call.1} parent=1 // pred_fallthru
      _
    // Predicated region
    $region6: #{tpu_custom_call.1} parent=1 // pred_check
      _
    $region7: #{tpu_custom_call.1} parent=1 // pred_check_branch
      %30 = sbr.rel (0) target = $region9
    $region8: #{tpu_custom_call.1} parent=1 // pred_region
      %s32 = ssub.s32 2048, 2048
      %33 = vsyncadd [#allocation6], %s32
      %s34 = sshll.u32 [#allocation5], 4
      %s35 = int_to_ptr.vmem [resolvable:$true] %s34
      %40 = dma.hbm_to_vmem [thread:$0]  %s1, 2048, %s35, [#allocation6], 128, 128, 8
    $region9: #{tpu_custom_call.1} parent=1 // pred_fallthru
      _
    // Predicated region
    $region10: #{tpu_custom_call.1} parent=1 // pred_check
      _
    $region11: #{tpu_custom_call.1} parent=1 // pred_check_branch
      %42 = sbr.rel (0) target = $region13
    $region12: #{tpu_custom_call.1} parent=1 // pred_region
      %s44 = ssub.s32 2048, 2048
      %45 = vsyncadd [#allocation6], %s44
      %s46 = sshll.u32 [#allocation7], 4
      %s47 = int_to_ptr.vmem [resolvable:$true] %s46
      %52 = dma.hbm_to_vmem [thread:$0]  %s2, 2048, %s47, [#allocation6], 128, 128, 8
    $region13: #{tpu_custom_call.1} parent=1 // pred_fallthru
      _
    // Predicated region
    $region14: #{tpu_custom_call.1} parent=1 // pred_check
      _
    $region15: #{tpu_custom_call.1} parent=1 // pred_check_branch
      %54 = sbr.rel (0) target = $region17
    $region16: #{tpu_custom_call.1} parent=1 // pred_region
      %s56 = ssub.s32 2048, 2048
      %57 = vsyncadd [#allocation9], %s56
      %s58 = sshll.u32 [#allocation8], 4
      %s59 = int_to_ptr.vmem [resolvable:$true] %s58
      %64 = dma.hbm_to_vmem [thread:$0]  %s3, 2048, %s59, [#allocation9], 128, 128, 8
    $region17: #{tpu_custom_call.1} parent=1 // pred_fallthru
      _
    // Predicated region
    $region18: #{tpu_custom_call.1} parent=1 // pred_check
      _
    $region19: #{tpu_custom_call.1} parent=1 // pred_check_branch
      %66 = sbr.rel (0) target = $region21
    $region20: #{tpu_custom_call.1} parent=1 // pred_region
      %67 = dma.done [#allocation3], 512
    $region21: #{tpu_custom_call.1} parent=1 // pred_fallthru
      _
    // Predicated region
    $region22: #{tpu_custom_call.1} parent=1 // pred_check
      _
    $region23: #{tpu_custom_call.1} parent=1 // pred_check_branch
      %69 = sbr.rel (0) target = $region25
    $region24: #{tpu_custom_call.1} parent=1 // pred_region
      %70 = dma.done [#allocation6], 2048
    $region25: #{tpu_custom_call.1} parent=1 // pred_fallthru
      _
    // Predicated region
    $region26: #{tpu_custom_call.1} parent=1 // pred_check
      _
    $region27: #{tpu_custom_call.1} parent=1 // pred_check_branch
      %72 = sbr.rel (0) target = $region29
    $region28: #{tpu_custom_call.1} parent=1 // pred_region
      %73 = dma.done [#allocation6], 2048
    $region29: #{tpu_custom_call.1} parent=1 // pred_fallthru
      _
    // Predicated region
    $region30: #{tpu_custom_call.1} parent=1 // pred_check
      _
    $region31: #{tpu_custom_call.1} parent=1 // pred_check_branch
      %75 = sbr.rel (0) target = $region33
    $region32: #{tpu_custom_call.1} parent=1 // pred_region
      %76 = dma.done [#allocation9], 2048
    $region33: #{tpu_custom_call.1} parent=1 // pred_fallthru
      _
    %v77 = vld [vmem:[#allocation2] sm:$0xff]
    %v78 = vld [vmem:[#allocation2 + $0x8] sm:$0xff]
    %v79 = vld [vmem:[#allocation2 + $0x10] sm:$0xff]
    %v80 = vld [vmem:[#allocation2 + $0x18] sm:$0xff]
    %v81 = vld [vmem:[#allocation5] sm:$0xff]
    %v82 = vld [vmem:[#allocation5 + $0x8] sm:$0xff]
    %v83 = vld [vmem:[#allocation5 + $0x10] sm:$0xff]
    %v84 = vld [vmem:[#allocation5 + $0x18] sm:$0xff]
    %v85 = vld [vmem:[#allocation5 + $0x20] sm:$0xff]
    %v86 = vld [vmem:[#allocation5 + $0x28] sm:$0xff]
    %v87 = vld [vmem:[#allocation5 + $0x30] sm:$0xff]
    %v88 = vld [vmem:[#allocation5 + $0x38] sm:$0xff]
    %v89 = vld [vmem:[#allocation5 + $0x40] sm:$0xff]
    %v90 = vld [vmem:[#allocation5 + $0x48] sm:$0xff]
    %v91 = vld [vmem:[#allocation5 + $0x50] sm:$0xff]
    %v92 = vld [vmem:[#allocation5 + $0x58] sm:$0xff]
    %v93 = vld [vmem:[#allocation5 + $0x60] sm:$0xff]
    %v94 = vld [vmem:[#allocation5 + $0x68] sm:$0xff]
    %v95 = vld [vmem:[#allocation5 + $0x70] sm:$0xff]
    %v96 = vld [vmem:[#allocation5 + $0x78] sm:$0xff]
    %97 = vmatprep.subr.mxu0 0.0
    %98 = vmatpush1.msra.mxu0 %v96
    %99 = vmatprep.subr.mxu0 0.0
    %100 = vmatpush1.msra.mxu0 %v95
    %101 = vmatprep.subr.mxu0 0.0
    %102 = vmatpush1.msra.mxu0 %v94
    %103 = vmatprep.subr.mxu0 0.0
    %104 = vmatpush1.msra.mxu0 %v93
    %105 = vmatprep.subr.mxu0 0.0
    %106 = vmatpush1.msra.mxu0 %v92
    %107 = vmatprep.subr.mxu0 0.0
    %108 = vmatpush1.msra.mxu0 %v91
    %109 = vmatprep.subr.mxu0 0.0
    %110 = vmatpush1.msra.mxu0 %v90
    %111 = vmatprep.subr.mxu0 0.0
    %112 = vmatpush1.msra.mxu0 %v89
    %113 = vmatprep.subr.mxu0 0.0
    %114 = vmatpush1.msra.mxu0 %v88
    %115 = vmatprep.subr.mxu0 0.0
    %116 = vmatpush1.msra.mxu0 %v87
    %117 = vmatprep.subr.mxu0 0.0
    %118 = vmatpush1.msra.mxu0 %v86
    %119 = vmatprep.subr.mxu0 0.0
    %120 = vmatpush1.msra.mxu0 %v85
    %121 = vmatprep.subr.mxu0 0.0
    %122 = vmatpush1.msra.mxu0 %v84
    %123 = vmatprep.subr.mxu0 0.0
    %124 = vmatpush1.msra.mxu0 %v83
    %125 = vmatprep.subr.mxu0 0.0
    %126 = vmatpush1.msra.mxu0 %v82
    %127 = vmatprep.subr.mxu0 0.0
    %128 = vmatpush1.msra.mxu0 %v81
    %129 = vmatprep.subr.mxu0 0.0
    %130 = vmatpush2.msra.mxu0 0.0
    %131 = vmatprep.subr.mxu0 0.0
    %132 = vmatpush2.msra.mxu0 0.0
    %133 = vmatprep.subr.mxu0 0.0
    %134 = vmatpush2.msra.mxu0 0.0
    %135 = vmatprep.subr.mxu0 0.0
    %136 = vmatpush2.msra.mxu0 0.0
    %137 = vmatprep.subr.mxu0 0.0
    %138 = vmatpush2.msra.mxu0 0.0
    %139 = vmatprep.subr.mxu0 0.0
    %140 = vmatpush2.msra.mxu0 0.0
    %141 = vmatprep.subr.mxu0 0.0
    %142 = vmatpush2.msra.mxu0 0.0
    %143 = vmatprep.subr.mxu0 0.0
    %144 = vmatpush2.msra.mxu0 0.0
    %145 = vmatprep.subr.mxu0 0.0
    %146 = vmatpush2.msra.mxu0 0.0
    %147 = vmatprep.subr.mxu0 0.0
    %148 = vmatpush2.msra.mxu0 0.0
    %149 = vmatprep.subr.mxu0 0.0
    %150 = vmatpush2.msra.mxu0 0.0
    %151 = vmatprep.subr.mxu0 0.0
    %152 = vmatpush2.msra.mxu0 0.0
    %153 = vmatprep.subr.mxu0 0.0
    %154 = vmatpush2.msra.mxu0 0.0
    %155 = vmatprep.subr.mxu0 0.0
    %156 = vmatpush2.msra.mxu0 0.0
    %157 = vmatprep.subr.mxu0 0.0
    %158 = vmatpush2.msra.mxu0 0.0
    %159 = vmatprep.subr.mxu0 0.0
    %160 = vmatpush2.msra.mxu0 0.0
    %161 = vmatprep.mubr.f32.mxu0 0.0
    %162 = vmatmul.mubr.f32.gmra.mxu0 %v77
    %v163 = vpop.f32.mrf.mxu0
    %v164 = vadd.f32 0.0, %v163
    %v165 = vpop.f32.mrf.mxu0
    %166 = vmatprep.mubr.f32.mxu0 0.0
    %167 = vmatmul.mubr.f32.gmra.mxu0 %v78
    %v168 = vpop.f32.mrf.mxu0
    %v169 = vadd.f32 0.0, %v168
    %v170 = vpop.f32.mrf.mxu0
    %171 = vmatprep.mubr.f32.mxu0 0.0
    %172 = vmatmul.mubr.f32.gmra.mxu0 %v79
    %v173 = vpop.f32.mrf.mxu0
    %v174 = vadd.f32 0.0, %v173
    %v175 = vpop.f32.mrf.mxu0
    %176 = vmatprep.mubr.f32.mxu0 0.0
    %177 = vmatmul.mubr.f32.gmra.mxu0 %v80
    %v178 = vpop.f32.mrf.mxu0
    %v179 = vadd.f32 0.0, %v178
    %v180 = vpop.f32.mrf.mxu0
    %181 = vdwg.mxu0
    %182 = vst [vmem:[#allocation10] sm:$0xff] %v164
    %183 = vst [vmem:[#allocation10 + $0x8] sm:$0xff] %v169
    %184 = vst [vmem:[#allocation10 + $0x10] sm:$0xff] %v174
    %185 = vst [vmem:[#allocation10 + $0x18] sm:$0xff] %v179
    %v186 = vld [vmem:[#allocation7] sm:$0xff]
    %v187 = vld [vmem:[#allocation7 + $0x8] sm:$0xff]
    %v188 = vld [vmem:[#allocation7 + $0x10] sm:$0xff]
    %v189 = vld [vmem:[#allocation7 + $0x18] sm:$0xff]
    %v190 = vld [vmem:[#allocation7 + $0x20] sm:$0xff]
    %v191 = vld [vmem:[#allocation7 + $0x28] sm:$0xff]
    %v192 = vld [vmem:[#allocation7 + $0x30] sm:$0xff]
    %v193 = vld [vmem:[#allocation7 + $0x38] sm:$0xff]
    %v194 = vld [vmem:[#allocation7 + $0x40] sm:$0xff]
    %v195 = vld [vmem:[#allocation7 + $0x48] sm:$0xff]
    %v196 = vld [vmem:[#allocation7 + $0x50] sm:$0xff]
    %v197 = vld [vmem:[#allocation7 + $0x58] sm:$0xff]
    %v198 = vld [vmem:[#allocation7 + $0x60] sm:$0xff]
    %v199 = vld [vmem:[#allocation7 + $0x68] sm:$0xff]
    %v200 = vld [vmem:[#allocation7 + $0x70] sm:$0xff]
    %v201 = vld [vmem:[#allocation7 + $0x78] sm:$0xff]
    %202 = vmatprep.subr.mxu0 0.0
    %203 = vmatpush1.msra.mxu0 %v201
    %204 = vmatprep.subr.mxu0 0.0
    %205 = vmatpush1.msra.mxu0 %v200
    %206 = vmatprep.subr.mxu0 0.0
    %207 = vmatpush1.msra.mxu0 %v199
    %208 = vmatprep.subr.mxu0 0.0
    %209 = vmatpush1.msra.mxu0 %v198
    %210 = vmatprep.subr.mxu0 0.0
    %211 = vmatpush1.msra.mxu0 %v197
    %212 = vmatprep.subr.mxu0 0.0
    %213 = vmatpush1.msra.mxu0 %v196
    %214 = vmatprep.subr.mxu0 0.0
    %215 = vmatpush1.msra.mxu0 %v195
    %216 = vmatprep.subr.mxu0 0.0
    %217 = vmatpush1.msra.mxu0 %v194
    %218 = vmatprep.subr.mxu0 0.0
    %219 = vmatpush1.msra.mxu0 %v193
    %220 = vmatprep.subr.mxu0 0.0
    %221 = vmatpush1.msra.mxu0 %v192
    %222 = vmatprep.subr.mxu0 0.0
    %223 = vmatpush1.msra.mxu0 %v191
    %224 = vmatprep.subr.mxu0 0.0
    %225 = vmatpush1.msra.mxu0 %v190
    %226 = vmatprep.subr.mxu0 0.0
    %227 = vmatpush1.msra.mxu0 %v189
    %228 = vmatprep.subr.mxu0 0.0
    %229 = vmatpush1.msra.mxu0 %v188
    %230 = vmatprep.subr.mxu0 0.0
    %231 = vmatpush1.msra.mxu0 %v187
    %232 = vmatprep.subr.mxu0 0.0
    %233 = vmatpush1.msra.mxu0 %v186
    %234 = vmatprep.subr.mxu0 0.0
    %235 = vmatpush2.msra.mxu0 0.0
    %236 = vmatprep.subr.mxu0 0.0
    %237 = vmatpush2.msra.mxu0 0.0
    %238 = vmatprep.subr.mxu0 0.0
    %239 = vmatpush2.msra.mxu0 0.0
    %240 = vmatprep.subr.mxu0 0.0
    %241 = vmatpush2.msra.mxu0 0.0
    %242 = vmatprep.subr.mxu0 0.0
    %243 = vmatpush2.msra.mxu0 0.0
    %244 = vmatprep.subr.mxu0 0.0
    %245 = vmatpush2.msra.mxu0 0.0
    %246 = vmatprep.subr.mxu0 0.0
    %247 = vmatpush2.msra.mxu0 0.0
    %248 = vmatprep.subr.mxu0 0.0
    %249 = vmatpush2.msra.mxu0 0.0
    %250 = vmatprep.subr.mxu0 0.0
    %251 = vmatpush2.msra.mxu0 0.0
    %252 = vmatprep.subr.mxu0 0.0
    %253 = vmatpush2.msra.mxu0 0.0
    %254 = vmatprep.subr.mxu0 0.0
    %255 = vmatpush2.msra.mxu0 0.0
    %256 = vmatprep.subr.mxu0 0.0
    %257 = vmatpush2.msra.mxu0 0.0
    %258 = vmatprep.subr.mxu0 0.0
    %259 = vmatpush2.msra.mxu0 0.0
    %260 = vmatprep.subr.mxu0 0.0
    %261 = vmatpush2.msra.mxu0 0.0
    %262 = vmatprep.subr.mxu0 0.0
    %263 = vmatpush2.msra.mxu0 0.0
    %264 = vmatprep.subr.mxu0 0.0
    %265 = vmatpush2.msra.mxu0 0.0
    %266 = vmatprep.mubr.f32.mxu0 0.0
    %267 = vmatmul.mubr.f32.gmra.mxu0 %v77
    %v268 = vpop.f32.mrf.mxu0
    %v269 = vadd.f32 0.0, %v268
    %v270 = vpop.f32.mrf.mxu0
    %271 = vmatprep.mubr.f32.mxu0 0.0
    %272 = vmatmul.mubr.f32.gmra.mxu0 %v78
    %v273 = vpop.f32.mrf.mxu0
    %v274 = vadd.f32 0.0, %v273
    %v275 = vpop.f32.mrf.mxu0
    %276 = vmatprep.mubr.f32.mxu0 0.0
    %277 = vmatmul.mubr.f32.gmra.mxu0 %v79
    %v278 = vpop.f32.mrf.mxu0
    %v279 = vadd.f32 0.0, %v278
    %v280 = vpop.f32.mrf.mxu0
    %281 = vmatprep.mubr.f32.mxu0 0.0
    %282 = vmatmul.mubr.f32.gmra.mxu0 %v80
    %v283 = vpop.f32.mrf.mxu0
    %v284 = vadd.f32 0.0, %v283
    %v285 = vpop.f32.mrf.mxu0
    %286 = vdwg.mxu0
    %287 = vst [vmem:[#allocation11] sm:$0xff] %v269
    %288 = vst [vmem:[#allocation11 + $0x8] sm:$0xff] %v274
    %289 = vst [vmem:[#allocation11 + $0x10] sm:$0xff] %v279
    %290 = vst [vmem:[#allocation11 + $0x18] sm:$0xff] %v284
    %v291 = vld [vmem:[#allocation8] sm:$0xff]
    %v292 = vld [vmem:[#allocation8 + $0x8] sm:$0xff]
    %v293 = vld [vmem:[#allocation8 + $0x10] sm:$0xff]
    %v294 = vld [vmem:[#allocation8 + $0x18] sm:$0xff]
    %v295 = vld [vmem:[#allocation8 + $0x20] sm:$0xff]
    %v296 = vld [vmem:[#allocation8 + $0x28] sm:$0xff]
    %v297 = vld [vmem:[#allocation8 + $0x30] sm:$0xff]
    %v298 = vld [vmem:[#allocation8 + $0x38] sm:$0xff]
    %v299 = vld [vmem:[#allocation8 + $0x40] sm:$0xff]
    %v300 = vld [vmem:[#allocation8 + $0x48] sm:$0xff]
    %v301 = vld [vmem:[#allocation8 + $0x50] sm:$0xff]
    %v302 = vld [vmem:[#allocation8 + $0x58] sm:$0xff]
    %v303 = vld [vmem:[#allocation8 + $0x60] sm:$0xff]
    %v304 = vld [vmem:[#allocation8 + $0x68] sm:$0xff]
    %v305 = vld [vmem:[#allocation8 + $0x70] sm:$0xff]
    %v306 = vld [vmem:[#allocation8 + $0x78] sm:$0xff]
    %307 = vmatprep.subr.mxu0 0.0
    %308 = vmatpush1.msra.mxu0 %v306
    %309 = vmatprep.subr.mxu0 0.0
    %310 = vmatpush1.msra.mxu0 %v305
    %311 = vmatprep.subr.mxu0 0.0
    %312 = vmatpush1.msra.mxu0 %v304
    %313 = vmatprep.subr.mxu0 0.0
    %314 = vmatpush1.msra.mxu0 %v303
    %315 = vmatprep.subr.mxu0 0.0
    %316 = vmatpush1.msra.mxu0 %v302
    %317 = vmatprep.subr.mxu0 0.0
    %318 = vmatpush1.msra.mxu0 %v301
    %319 = vmatprep.subr.mxu0 0.0
    %320 = vmatpush1.msra.mxu0 %v300
    %321 = vmatprep.subr.mxu0 0.0
    %322 = vmatpush1.msra.mxu0 %v299
    %323 = vmatprep.subr.mxu0 0.0
    %324 = vmatpush1.msra.mxu0 %v298
    %325 = vmatprep.subr.mxu0 0.0
    %326 = vmatpush1.msra.mxu0 %v297
    %327 = vmatprep.subr.mxu0 0.0
    %328 = vmatpush1.msra.mxu0 %v296
    %329 = vmatprep.subr.mxu0 0.0
    %330 = vmatpush1.msra.mxu0 %v295
    %331 = vmatprep.subr.mxu0 0.0
    %332 = vmatpush1.msra.mxu0 %v294
    %333 = vmatprep.subr.mxu0 0.0
    %334 = vmatpush1.msra.mxu0 %v293
    %335 = vmatprep.subr.mxu0 0.0
    %336 = vmatpush1.msra.mxu0 %v292
    %337 = vmatprep.subr.mxu0 0.0
    %338 = vmatpush1.msra.mxu0 %v291
    %339 = vmatprep.subr.mxu0 0.0
    %340 = vmatpush2.msra.mxu0 0.0
    %341 = vmatprep.subr.mxu0 0.0
    %342 = vmatpush2.msra.mxu0 0.0
    %343 = vmatprep.subr.mxu0 0.0
    %344 = vmatpush2.msra.mxu0 0.0
    %345 = vmatprep.subr.mxu0 0.0
    %346 = vmatpush2.msra.mxu0 0.0
    %347 = vmatprep.subr.mxu0 0.0
    %348 = vmatpush2.msra.mxu0 0.0
    %349 = vmatprep.subr.mxu0 0.0
    %350 = vmatpush2.msra.mxu0 0.0
    %351 = vmatprep.subr.mxu0 0.0
    %352 = vmatpush2.msra.mxu0 0.0
    %353 = vmatprep.subr.mxu0 0.0
    %354 = vmatpush2.msra.mxu0 0.0
    %355 = vmatprep.subr.mxu0 0.0
    %356 = vmatpush2.msra.mxu0 0.0
    %357 = vmatprep.subr.mxu0 0.0
    %358 = vmatpush2.msra.mxu0 0.0
    %359 = vmatprep.subr.mxu0 0.0
    %360 = vmatpush2.msra.mxu0 0.0
    %361 = vmatprep.subr.mxu0 0.0
    %362 = vmatpush2.msra.mxu0 0.0
    %363 = vmatprep.subr.mxu0 0.0
    %364 = vmatpush2.msra.mxu0 0.0
    %365 = vmatprep.subr.mxu0 0.0
    %366 = vmatpush2.msra.mxu0 0.0
    %367 = vmatprep.subr.mxu0 0.0
    %368 = vmatpush2.msra.mxu0 0.0
    %369 = vmatprep.subr.mxu0 0.0
    %370 = vmatpush2.msra.mxu0 0.0
    %371 = vmatprep.mubr.f32.mxu0 0.0
    %372 = vmatmul.mubr.f32.gmra.mxu0 %v77
    %v373 = vpop.f32.mrf.mxu0
    %v374 = vadd.f32 0.0, %v373
    %v375 = vpop.f32.mrf.mxu0
    %376 = vmatprep.mubr.f32.mxu0 0.0
    %377 = vmatmul.mubr.f32.gmra.mxu0 %v78
    %v378 = vpop.f32.mrf.mxu0
    %v379 = vadd.f32 0.0, %v378
    %v380 = vpop.f32.mrf.mxu0
    %381 = vmatprep.mubr.f32.mxu0 0.0
    %382 = vmatmul.mubr.f32.gmra.mxu0 %v79
    %v383 = vpop.f32.mrf.mxu0
    %v384 = vadd.f32 0.0, %v383
    %v385 = vpop.f32.mrf.mxu0
    %386 = vmatprep.mubr.f32.mxu0 0.0
    %387 = vmatmul.mubr.f32.gmra.mxu0 %v80
    %v388 = vpop.f32.mrf.mxu0
    %v389 = vadd.f32 0.0, %v388
    %v390 = vpop.f32.mrf.mxu0
    %391 = vdwg.mxu0
    %392 = vst [vmem:[#allocation13] sm:$0xff] %v374
    %393 = vst [vmem:[#allocation13 + $0x8] sm:$0xff] %v379
    %394 = vst [vmem:[#allocation13 + $0x10] sm:$0xff] %v384
    %395 = vst [vmem:[#allocation13 + $0x18] sm:$0xff] %v389
    // Predicated region
    $region34: #{tpu_custom_call.1} parent=1 // pred_check
      _
    $region35: #{tpu_custom_call.1} parent=1 // pred_check_branch
      %397 = sbr.rel (0) target = $region37
    $region36: #{tpu_custom_call.1} parent=1 // pred_region
      %s399 = ssub.s32 512, 512
      %400 = vsyncadd [#allocation4], %s399
      %s401 = sshll.u32 [#allocation10], 4
      %s402 = int_to_ptr.vmem [resolvable:$true] %s401
      %407 = dma.vmem_to_hbm [thread:$0]  %s402, 512, %s4, [#allocation4], 128, 128, 8
    $region37: #{tpu_custom_call.1} parent=1 // pred_fallthru
      _
    // Predicated region
    $region38: #{tpu_custom_call.1} parent=1 // pred_check
      _
    $region39: #{tpu_custom_call.1} parent=1 // pred_check_branch
      %409 = sbr.rel (0) target = $region41
    $region40: #{tpu_custom_call.1} parent=1 // pred_region
      %s411 = ssub.s32 512, 512
      %412 = vsyncadd [#allocation12], %s411
      %s413 = sshll.u32 [#allocation11], 4
      %s414 = int_to_ptr.vmem [resolvable:$true] %s413
      %419 = dma.vmem_to_hbm [thread:$0]  %s414, 512, %s5, [#allocation12], 128, 128, 8
    $region41: #{tpu_custom_call.1} parent=1 // pred_fallthru
      _
    // Predicated region
    $region42: #{tpu_custom_call.1} parent=1 // pred_check
      _
    $region43: #{tpu_custom_call.1} parent=1 // pred_check_branch
      %421 = sbr.rel (0) target = $region45
    $region44: #{tpu_custom_call.1} parent=1 // pred_region
      %s423 = ssub.s32 512, 512
      %424 = vsyncadd [#allocation12], %s423
      %s425 = sshll.u32 [#allocation13], 4
      %s426 = int_to_ptr.vmem [resolvable:$true] %s425
      %431 = dma.vmem_to_hbm [thread:$0]  %s426, 512, %s6, [#allocation12], 128, 128, 8
    $region45: #{tpu_custom_call.1} parent=1 // pred_fallthru
      _
    // Predicated region
    $region46: #{tpu_custom_call.1} parent=1 // pred_check
      _
    $region47: #{tpu_custom_call.1} parent=1 // pred_check_branch
      %433 = sbr.rel (0) target = $region49
    $region48: #{tpu_custom_call.1} parent=1 // pred_region
      %434 = dma.done [#allocation4], 512
    $region49: #{tpu_custom_call.1} parent=1 // pred_fallthru
      _
    // Predicated region
    $region50: #{tpu_custom_call.1} parent=1 // pred_check
      _
    $region51: #{tpu_custom_call.1} parent=1 // pred_check_branch
      %436 = sbr.rel (0) target = $region53
    $region52: #{tpu_custom_call.1} parent=1 // pred_region
      %437 = dma.done [#allocation12], 512
    $region53: #{tpu_custom_call.1} parent=1 // pred_fallthru
      _
    // Predicated region
    $region54: #{tpu_custom_call.1} parent=1 // pred_check
      _
    $region55: #{tpu_custom_call.1} parent=1 // pred_check_branch
      %439 = sbr.rel (0) target = $region57
    $region56: #{tpu_custom_call.1} parent=1 // pred_region
      %440 = dma.done [#allocation12], 512
    $region57: #{tpu_custom_call.1} parent=1 // pred_fallthru
      _
    %441 = vsyncpa [#allocation3], 1
    %442 = vsyncpa [#allocation6], 1
    %443 = vsyncpa [#allocation9], 1
    %444 = vsyncpa [#allocation4], 1
    %445 = vsyncpa [#allocation12], 1

</llo_original>
